<compile_context>
chip_gen: v6e
topology: v6e:2x2x1
jax: 0.10.0
libtpu: 0.0.40
codegen_flags: <defaults>
</compile_context>

<pallas_src>
import functools

import numpy as np
import jax
import jax.numpy as jnp
from jax.experimental import pallas as pl
from jax.experimental.pallas import tpu as pltpu

EPS = 1e-5
LANE = 128                              # channel padding target (lane width)
_VMEM_LIMIT = 48 * 1024 * 1024          # headroom under v7x's 64 MiB physical VMEM


def _round_up(x, m):
    return (x + m - 1) // m * m


def _compiler_params():
    # All grids below are embarrassingly parallel (partial stats per tile,
    # reduced outside), so the single grid axis can shard across v7x's 2 TCs.
    return pltpu.CompilerParams(
        dimension_semantics=("parallel",),
        vmem_limit_bytes=_VMEM_LIMIT)


# ---------------------------------------------------------------------------
# Kernels
# ---------------------------------------------------------------------------
def _write_stats(stat_ref, y):
    """Write per-tile (sum, sum-of-squares) over rows into a (1, 2, C) block."""
    s1 = jnp.sum(y, axis=0, keepdims=True)               # (1, C) f32
    s2 = jnp.sum(y * y, axis=0, keepdims=True)           # (1, C) f32
    row = jax.lax.broadcasted_iota(jnp.int32, (2, y.shape[-1]), 0)
    stat_ref[...] = jnp.where(row == 0, s1, s2).reshape(stat_ref.shape)


def _mm_stats_kernel(x_ref, w_ref, y_ref, stat_ref):
    """1x1-conv tile: y = x @ w (bf16 in, f32 accumulate) + partial BN stats."""
    y = jnp.dot(x_ref[...], w_ref[...], preferred_element_type=jnp.float32)
    y_ref[...] = y.astype(y_ref.dtype)
    _write_stats(stat_ref, y)


def _conv3x3_stats_kernel(x_ref, w_ref, m_ref, y_ref, stat_ref, *, W, HW):
    """3x3 conv (stride 1, pad 1) for one image as 9 shifted matmuls.

    x_ref : (1, HW + 2*W + 2, Cin) row-flattened NHWC image with W+1 zero
            halo rows on top and bottom (so every tap is a static slice).
    w_ref : (9*Cin, Cout) taps stacked in (kh, kw) row-major order.
    m_ref : (9, HW, 1) 0/1 masks killing the W wrap-around rows per tap.
    """
    cin = x_ref.shape[-1]
    cout = y_ref.shape[-1]
    xi = x_ref[0]                                         # (HW + 2W + 2, Cin) bf16
    acc = jnp.zeros((HW, cout), jnp.float32)
    t = 0
    for dh in (-1, 0, 1):
        for dw in (-1, 0, 1):
            off = (dh + 1) * W + dw + 1                   # static start row in halo block
            xs = xi[off:off + HW, :] * m_ref[t]           # invalid rows zeroed (bf16)
            wt = w_ref[t * cin:(t + 1) * cin, :]          # (Cin, Cout) tap weights
            acc = acc + jnp.dot(xs, wt, preferred_element_type=jnp.float32)
            t += 1
    y_ref[0] = acc.astype(y_ref.dtype)
    _write_stats(stat_ref, acc)


def _bn_act_mm_stats_kernel(y_ref, scale_ref, shift_ref, w_ref, o_ref, stat_ref,
                            *, tm, m_valid, mask_rows):
    """Fused: a = relu(y*scale+shift) (bf16), out = a @ w (+ partial BN stats).

    If mask_rows, zero rows with global index >= m_valid (row padding) so the
    downstream statistics stay exact.
    """
    a = jnp.maximum(y_ref[...] * scale_ref[...] + shift_ref[...], 0.0)
    if mask_rows:
        row = pl.program_id(0) * tm + jax.lax.broadcasted_iota(
            jnp.int32, a.shape, 0)
        a = jnp.where(row < m_valid, a, 0.0)
    a = a.astype(jnp.bfloat16)
    y = jnp.dot(a, w_ref[...], preferred_element_type=jnp.float32)
    o_ref[...] = y.astype(o_ref.dtype)
    _write_stats(stat_ref, y)


def _bn_act_kernel(y_ref, scale_ref, shift_ref, o_ref):
    o = y_ref[...] * scale_ref[...] + shift_ref[...]
    o_ref[...] = jnp.maximum(o, 0.0).astype(o_ref.dtype)


def _bn_act_res_kernel(y_ref, scale_ref, shift_ref, r_ref, o_ref):
    o = y_ref[...] * scale_ref[...] + shift_ref[...] + r_ref[...].astype(jnp.float32)
    o_ref[...] = jnp.maximum(o, 0.0).astype(o_ref.dtype)


# ---------------------------------------------------------------------------
# pallas_call wrappers
# ---------------------------------------------------------------------------
def matmul_stats(x2d, w, tm):
    """Row-tiled fused matmul + partial BN statistics.

    x2d: (Mp, K) bf16 with Mp % tm == 0;  w: (K, C) bf16.
    Returns y: (Mp, C) f32 and stats: (2, C) f32 (channel sum, sum of squares).
    """
    Mp, K = x2d.shape
    _, C = w.shape
    n_tiles = Mp // tm
    cost = pl.CostEstimate(flops=2 * Mp * K * C, transcendentals=0,
                           bytes_accessed=2 * Mp * K + 2 * K * C + 4 * Mp * C)
    y, part = pl.pallas_call(
        _mm_stats_kernel,
        out_shape=(jax.ShapeDtypeStruct((Mp, C), jnp.float32),
                   jax.ShapeDtypeStruct((n_tiles, 2, C), jnp.float32)),
        grid=(n_tiles,),
        in_specs=[pl.BlockSpec((tm, K), lambda i: (i, 0)),
                  pl.BlockSpec((K, C), lambda i: (0, 0))],
        out_specs=(pl.BlockSpec((tm, C), lambda i: (i, 0)),
                   pl.BlockSpec((1, 2, C), lambda i: (i, 0, 0))),
        compiler_params=_compiler_params(),
        cost_estimate=cost,
    )(x2d, w)
    return y, jnp.sum(part, axis=0)


def conv3x3_stats(x_halo, w, mask, H, W):
    """Per-image 3x3 conv + partial BN stats; grid over the batch dimension."""
    N, HWp, Cin = x_halo.shape
    HW = H * W
    Cout = w.shape[1]
    kern = functools.partial(_conv3x3_stats_kernel, W=W, HW=HW)
    cost = pl.CostEstimate(
        flops=2 * N * HW * 9 * Cin * Cout, transcendentals=0,
        bytes_accessed=2 * N * HWp * Cin + 2 * 9 * Cin * Cout + 4 * N * HW * Cout)
    y, part = pl.pallas_call(
        kern,
        out_shape=(jax.ShapeDtypeStruct((N, HW, Cout), jnp.float32),
                   jax.ShapeDtypeStruct((N, 2, Cout), jnp.float32)),
        grid=(N,),
        in_specs=[pl.BlockSpec((1, HWp, Cin), lambda n: (n, 0, 0)),
                  pl.BlockSpec((9 * Cin, Cout), lambda n: (0, 0)),
                  pl.BlockSpec((9, HW, 1), lambda n: (0, 0, 0))],
        out_specs=(pl.BlockSpec((1, HW, Cout), lambda n: (n, 0, 0)),
                   pl.BlockSpec((1, 2, Cout), lambda n: (n, 0, 0))),
        compiler_params=_compiler_params(),
        cost_estimate=cost,
    )(x_halo, w, mask)
    return y, jnp.sum(part, axis=0)


def bn_act_matmul_stats(y2, scale, shift, w, tm, m_valid):
    """Fused bn2+ReLU -> conv3 (1x1) matmul + partial bn3 statistics."""
    Mp, K = y2.shape
    _, C = w.shape
    n_tiles = Mp // tm
    kern = functools.partial(_bn_act_mm_stats_kernel, tm=tm, m_valid=m_valid,
                             mask_rows=(Mp > m_valid))
    cost = pl.CostEstimate(flops=2 * Mp * K * C + 3 * Mp * K, transcendentals=0,
                           bytes_accessed=4 * Mp * K + 2 * K * C + 4 * Mp * C)
    y, part = pl.pallas_call(
        kern,
        out_shape=(jax.ShapeDtypeStruct((Mp, C), jnp.float32),
                   jax.ShapeDtypeStruct((n_tiles, 2, C), jnp.float32)),
        grid=(n_tiles,),
        in_specs=[pl.BlockSpec((tm, K), lambda i: (i, 0)),
                  pl.BlockSpec((1, K), lambda i: (0, 0)),
                  pl.BlockSpec((1, K), lambda i: (0, 0)),
                  pl.BlockSpec((K, C), lambda i: (0, 0))],
        out_specs=(pl.BlockSpec((tm, C), lambda i: (i, 0)),
                   pl.BlockSpec((1, 2, C), lambda i: (i, 0, 0))),
        compiler_params=_compiler_params(),
        cost_estimate=cost,
    )(y2, scale, shift, w)
    return y, jnp.sum(part, axis=0)


def bn_act(y, scale, shift, residual=None, out_dtype=jnp.bfloat16, tm=256):
    """out = relu(y * scale + shift (+ residual)), row-tiled."""
    Mp, C = y.shape
    n_tiles = Mp // tm
    col_spec = pl.BlockSpec((1, C), lambda i: (0, 0))
    row_spec = pl.BlockSpec((tm, C), lambda i: (i, 0))
    if residual is None:
        kernel, ins = _bn_act_kernel, (y, scale, shift)
        in_specs = [row_spec, col_spec, col_spec]
    else:
        kernel, ins = _bn_act_res_kernel, (y, scale, shift, residual)
        in_specs = [row_spec, col_spec, col_spec, row_spec]
    return pl.pallas_call(
        kernel,
        out_shape=jax.ShapeDtypeStruct((Mp, C), out_dtype),
        grid=(n_tiles,),
        in_specs=in_specs,
        out_specs=row_spec,
        compiler_params=_compiler_params(),
    )(*ins)


# ---------------------------------------------------------------------------
# Plain-JAX glue
# ---------------------------------------------------------------------------
def _fold_bn(stats, count, gamma, beta):
    """Fold training-mode BatchNorm into per-channel scale/shift (all f32)."""
    mean = stats[0] / count
    var = jnp.maximum(stats[1] / count - mean * mean, 0.0)
    scale = gamma * jax.lax.rsqrt(var + EPS)
    shift = beta - mean * scale
    return scale.reshape(1, -1), shift.reshape(1, -1)


def _boundary_masks(H, W):
    """(9, H*W, 1) 0/1 masks: kill taps that fall outside the HxW image."""
    hh, ww = np.meshgrid(np.arange(H), np.arange(W), indexing="ij")
    ms = []
    for dh in (-1, 0, 1):
        for dw in (-1, 0, 1):
            valid = ((hh + dh >= 0) & (hh + dh < H) &
                     (ww + dw >= 0) & (ww + dw < W))
            ms.append(valid.reshape(H * W, 1))
    return jnp.asarray(np.stack(ms, axis=0).astype(np.float32), dtype=jnp.bfloat16)


def init_params(key, inplanes, planes):
    """Deterministic parameter init with PyTorch-__init__ shapes."""
    ks = jax.random.split(key, 9)
    return {
        "w1": jax.random.normal(ks[0], (planes, inplanes, 1, 1), jnp.float32) * 0.1,
        "w2": jax.random.normal(ks[1], (planes, planes, 3, 3), jnp.float32) * 0.1,
        "w3": jax.random.normal(ks[2], (planes * 4, planes, 1, 1), jnp.float32) * 0.1,
        "g1": 1.0 + 0.1 * jax.random.normal(ks[3], (planes,), jnp.float32),
        "b1": 0.1 * jax.random.normal(ks[4], (planes,), jnp.float32),
        "g2": 1.0 + 0.1 * jax.random.normal(ks[5], (planes,), jnp.float32),
        "b2": 0.1 * jax.random.normal(ks[6], (planes,), jnp.float32),
        "g3": 1.0 + 0.1 * jax.random.normal(ks[7], (planes * 4,), jnp.float32),
        "b3": 0.1 * jax.random.normal(ks[8], (planes * 4,), jnp.float32),
    }


def bottleneck_forward(x_nchw, p, stride=1, tm=256):
    """Pallas implementation of Bottleneck.forward (downsample=None)."""
    N, Cin, H, W = x_nchw.shape
    planes = p["w1"].shape[0]
    assert stride == 1 and Cin == planes * 4, \
        "downsample=None requires stride=1 identity residual"
    # TODO(synk): stride>1 / downsample branch not implemented (matches downsample=None usage).

    Cin_p = _round_up(Cin, LANE)          # conv3 output == residual channels
    Cmid_p = _round_up(planes, LANE)      # conv1 / conv2 output channels

    M = N * H * W
    tm = _round_up(max(16, min(tm, _round_up(M, 16))), 16)
    Mp = _round_up(M, tm)

    # NCHW -> NHWC, channel/row pad, flatten rows, bf16
    x = jnp.transpose(x_nchw, (0, 2, 3, 1)).astype(jnp.float32)
    x2d = jnp.pad(x.reshape(M, Cin),
                  ((0, Mp - M), (0, Cin_p - Cin))).astype(jnp.bfloat16)

    # PyTorch conv weights (out, in, kh, kw) -> padded matmul layout, bf16
    w1 = jnp.pad(p["w1"][:, :, 0, 0].T,
                 ((0, Cin_p - Cin), (0, Cmid_p - planes))).astype(jnp.bfloat16)
    w2 = jnp.transpose(p["w2"], (2, 3, 1, 0))                       # (3,3,in,out)
    w2 = jnp.pad(w2, ((0, 0), (0, 0),
                      (0, Cmid_p - planes), (0, Cmid_p - planes)))
    w2 = w2.reshape(9 * Cmid_p, Cmid_p).astype(jnp.bfloat16)
    w3 = jnp.pad(p["w3"][:, :, 0, 0].T,
                 ((0, Cmid_p - planes), (0, Cin_p - Cin))).astype(jnp.bfloat16)

    def padc(v, cpad):                    # pad gamma/beta with zeros (padded lanes -> 0)
        return jnp.pad(v.astype(jnp.float32), (0, cpad - v.shape[0]))

    g1, b1 = padc(p["g1"], Cmid_p), padc(p["b1"], Cmid_p)
    g2, b2 = padc(p["g2"], Cmid_p), padc(p["b2"], Cmid_p)
    g3, b3 = padc(p["g3"], Cin_p), padc(p["b3"], Cin_p)

    # ---- stage 1: 1x1 conv + BN + ReLU --------------------------------------
    y1, st1 = matmul_stats(x2d, w1, tm)
    sc1, sh1 = _fold_bn(st1, M, g1, b1)
    out1 = bn_act(y1, sc1, sh1, out_dtype=jnp.bfloat16, tm=tm)       # (Mp, Cmid_p)

    # ---- stage 2: 3x3 conv (stride 1, pad 1) + BN stats ---------------------
    HW = H * W
    img = out1[:M].reshape(N, HW, Cmid_p)
    img = jnp.pad(img, ((0, 0), (W + 1, W + 1), (0, 0)))             # zero halo rows
    mask = _boundary_masks(H, W)
    y2, st2 = conv3x3_stats(img, w2, mask, H, W)
    sc2, sh2 = _fold_bn(st2, M, g2, b2)
    y2f = jnp.pad(y2.reshape(M, Cmid_p), ((0, Mp - M), (0, 0)))

    # ---- stage 3 (fused): bn2 + ReLU -> 1x1 conv3 + bn3 stats ---------------
    y3, st3 = bn_act_matmul_stats(y2f, sc2, sh2, w3, tm, M)
    sc3, sh3 = _fold_bn(st3, M, g3, b3)

    # ---- finalize: bn3 + identity residual + ReLU ---------------------------
    out3 = bn_act(y3, sc3, sh3, residual=x2d, out_dtype=jnp.float32, tm=tm)

    out = out3[:M, :Cin].reshape(N, H, W, Cin)
    return jnp.transpose(out, (0, 3, 1, 2))


# ---------------------------------------------------------------------------
# Pure-JAX reference with the same mixed precision (bf16 conv inputs,
# f32 accumulation / BN math) — PyTorch training-mode BatchNorm semantics.
# ---------------------------------------------------------------------------
def _ref_forward(x_nchw, p):
    f32, bf16 = jnp.float32, jnp.bfloat16
    x = jnp.transpose(x_nchw, (0, 2, 3, 1)).astype(f32)

    def conv(y, w, padding):
        wj = jnp.transpose(w, (2, 3, 1, 0)).astype(bf16)   # HWIO
        return jax.lax.conv_general_dilated(
            y.astype(bf16), wj, (1, 1), padding,
            dimension_numbers=("NHWC", "HWIO", "NHWC"),
            preferred_element_type=f32)

    def bn(y, g, b):
        mean = jnp.mean(y, axis=(0, 1, 2), keepdims=True)
        var = jnp.mean(jnp.square(y - mean), axis=(0, 1, 2), keepdims=True)
        return (y - mean) * jax.lax.rsqrt(var + EPS) * g + b

    out = jax.nn.relu(bn(conv(x, p["w1"], "VALID"), p["g1"], p["b1"]))
    out = jax.nn.relu(bn(conv(out, p["w2"], [(1, 1), (1, 1)]), p["g2"], p["b2"]))
    out = bn(conv(out, p["w3"], "VALID"), p["g3"], p["b3"])
    out = jax.nn.relu(out + x.astype(bf16).astype(f32))
    return jnp.transpose(out, (0, 3, 1, 2))


if __name__ == "__main__":
    key = jax.random.PRNGKey(0)
    k_x, k_p = jax.random.split(key)

    N, planes, H, W = 2, 4, 8, 8
    inplanes = planes * 4                        # identity residual (downsample=None)
    x = jax.random.normal(k_x, (N, inplanes, H, W), jnp.float32)   # NCHW like PyTorch
    params = init_params(k_p, inplanes, planes)

    # tm=48 at this toy size (M=128) exercises the multi-tile grid, the
    # partial-stat reduction AND the row-padding mask path (Mp=144 > M).
    out = jax.block_until_ready(bottleneck_forward(x, params, stride=1, tm=48))
    ref = jax.block_until_ready(_ref_forward(x, params))

    assert out.shape == (N, planes * 4, H, W)
    assert np.allclose(np.asarray(out), np.asarray(ref), rtol=1e-2, atol=1e-2), \
        "mismatch vs reference"
    print("KERNEL_OK")
</pallas_src>

<mosaic_0001>
module attributes {stable_mosaic.version = 11 : i64} {
  func.func @_mm_stats_kernel(%arg0: i32, %arg1: memref<48x128xbf16, #tpu.memory_space<vmem>>, %arg2: memref<128x128xbf16, #tpu.memory_space<vmem>>, %arg3: memref<48x128xf32, #tpu.memory_space<vmem>>, %arg4: memref<1x2x128xf32, #tpu.memory_space<vmem>>) attributes {dimension_semantics = [#tpu.dimension_semantics<parallel>], iteration_bounds = array<i64: 3>, scalar_prefetch = 0 : i64, scratch_operands = 0 : i64, tpu.core_type = #tpu.core_type<tc>, window_params = [{transform_indices = @transform_0, window_bounds = array<i64: 48, 128>}, {pipeline_mode = #tpu.pipeline_mode<synchronous>, transform_indices = @transform_1, window_bounds = array<i64: 128, 128>}, {transform_indices = @transform_2, window_bounds = array<i64: 48, 128>}, {transform_indices = @transform_3, window_bounds = array<i64: 1, 2, 128>}]} {
    %c0 = arith.constant 0 : index
    %c0_0 = arith.constant 0 : index
    %0 = vector.load %arg1[%c0, %c0_0] : memref<48x128xbf16, #tpu.memory_space<vmem>>, vector<48x128xbf16>
    %c0_1 = arith.constant 0 : index
    %c0_2 = arith.constant 0 : index
    %1 = vector.load %arg2[%c0_1, %c0_2] : memref<128x128xbf16, #tpu.memory_space<vmem>>, vector<128x128xbf16>
    %cst = arith.constant dense<0.000000e+00> : vector<48x128xf32>
    %2 = tpu.matmul %0, %1, %cst {dimension_numbers = #tpu.dot_dimension_numbers<[1], [0], [0], [1], [0, 0, 1, 1], [], []>} : vector<48x128xbf16>, vector<128x128xbf16>, vector<48x128xf32> -> vector<48x128xf32>
    %c0_3 = arith.constant 0 : index
    %c0_4 = arith.constant 0 : index
    %3 = vector.load %arg3[%c0_3, %c0_4] : memref<48x128xf32, #tpu.memory_space<vmem>>, vector<48x128xf32>
    tpu.vector_store %arg3[%c0_3, %c0_4], %2 {strides = array<i32>} : memref<48x128xf32, #tpu.memory_space<vmem>>, vector<48x128xf32>,
    %cst_5 = arith.constant dense<0.000000e+00> : vector<128xf32>
    %4 = vector.multi_reduction <add>, %2, %cst_5 [0] : vector<48x128xf32> to vector<128xf32>
    %5 = vector.shape_cast %4 : vector<128xf32> to vector<1x128xf32>
    %6 = arith.mulf %2, %2 : vector<48x128xf32>
    %cst_6 = arith.constant dense<0.000000e+00> : vector<128xf32>
    %7 = vector.multi_reduction <add>, %6, %cst_6 [0] : vector<48x128xf32> to vector<128xf32>
    %8 = vector.shape_cast %7 : vector<128xf32> to vector<1x128xf32>
    %9 = tpu.iota {dimensions = array<i32: 0>} : vector<2x128xi32>
    %c0_i32 = arith.constant 0 : i32
    %10 = vector.broadcast %c0_i32 : i32 to vector<2x128xi32>
    %11 = arith.cmpi eq, %9, %10 : vector<2x128xi32>
    %12 = vector.shape_cast %5 : vector<1x128xf32> to vector<1x128xf32>
    %13 = vector.broadcast %12 : vector<1x128xf32> to vector<2x128xf32>
    %14 = vector.shape_cast %8 : vector<1x128xf32> to vector<1x128xf32>
    %15 = vector.broadcast %14 : vector<1x128xf32> to vector<2x128xf32>
    %16 = arith.select %11, %13, %15 : vector<2x128xi1>, vector<2x128xf32>
    %17 = vector.shape_cast %16 : vector<2x128xf32> to vector<1x2x128xf32>
    %c0_7 = arith.constant 0 : index
    %c0_8 = arith.constant 0 : index
    %c0_9 = arith.constant 0 : index
    %18 = vector.load %arg4[%c0_7, %c0_8, %c0_9] : memref<1x2x128xf32, #tpu.memory_space<vmem>>, vector<1x2x128xf32>
    tpu.vector_store %arg4[%c0_7, %c0_8, %c0_9], %17 {strides = array<i32>} : memref<1x2x128xf32, #tpu.memory_space<vmem>>, vector<1x2x128xf32>,
    return
  }
  func.func @transform_0(%arg0: i32) -> (i32, i32) {
    %c0_i32 = arith.constant 0 : i32
    %c0_i32_0 = arith.constant 0 : i32
    return %arg0, %c0_i32 : i32, i32
  }
  func.func @transform_1(%arg0: i32) -> (i32, i32) {
    %c0_i32 = arith.constant 0 : i32
    %c0_i32_0 = arith.constant 0 : i32
    %c0_i32_1 = arith.constant 0 : i32
    return %c0_i32, %c0_i32_0 : i32, i32
  }
  func.func @transform_2(%arg0: i32) -> (i32, i32) {
    %c0_i32 = arith.constant 0 : i32
    %c0_i32_0 = arith.constant 0 : i32
    return %arg0, %c0_i32 : i32, i32
  }
  func.func @transform_3(%arg0: i32) -> (i32, i32, i32) {
    %c0_i32 = arith.constant 0 : i32
    %c0_i32_0 = arith.constant 0 : i32
    %c0_i32_1 = arith.constant 0 : i32
    return %arg0, %c0_i32, %c0_i32_0 : i32, i32, i32
  }
}

</mosaic_0001>

<llo_original>
// kernel: tpu_custom_call.1
$region0: #{tpu_custom_call.1}
  #allocation0 [shape = 'u32[]', space=smem, size = 0x4, offset = 0x4, fixed_abs, tag = 'smem constant byte address 0x4 - core index']
  #allocation1 [shape = 'u32[144,128]{1,0:T(1,128)}', space=vmem, size = 0x12000, scoped, tag = 'internal scratch']
  %s0 = inlined_call_operand.hbm [shape: bf16[144,128], index: 0, kind: input, shape index: {}]
  %s1 = inlined_call_operand.hbm [shape: bf16[128,128], index: 1, kind: input, shape index: {}]
  %s2 = inlined_call_operand.hbm [shape: f32[144,128], index: 2, kind: output, shape index: {0}]
  %s3 = inlined_call_operand.hbm [shape: f32[3,2,128], index: 3, kind: output, shape index: {1}]
  %4 = xla_tuple %s2, %s3
  %s5 = sld [smem:[#allocation0]]
  $region57: #{tpu_custom_call.1} parent=0
    _
  %s7 = ssub.s32 1, %s5
  %s8 = scalar_select 0, %s7, %s5
  $region1: #{tpu_custom_call.1} parent=0
    #allocation2 [shape = 'u8[24576]{0}', space=vmem, size = 0x6000, scoped, tag = 'input window, operand 0']
    #allocation3 [shape = 's32[2]{0}', space=sflag, size = 0x8, scoped, tag = 'scoped memory for tpu_custom_call.1']
    #allocation4 [shape = 's32[2]{0}', space=sflag, size = 0x8, scoped, tag = 'scoped memory for tpu_custom_call.1']
    #allocation5 [shape = 'u8[32768]{0}', space=vmem, size = 0x8000, scoped, tag = 'input window, operand 1, single buffered']
    #allocation6 [shape = 's32[1]{0}', space=sflag, size = 0x4, scoped, tag = 'scoped memory for tpu_custom_call.1']
    #allocation7 [shape = 'u8[49152]{0}', space=vmem, size = 0xc000, scoped, tag = 'output window, operand 0']
    #allocation8 [shape = 'u8[2048]{0}', space=vmem, size = 0x800, scoped, tag = 'output window, operand 1']
    #allocation9 [shape = 's32[2]{0}', space=sflag, size = 0x8, scoped, tag = 'scoped memory for tpu_custom_call.1']
    %9 = vsyncpa [#allocation3], 0
    %s10 = scalar_lea.sflag [#allocation3], 1
    %11 = vsyncpa %s10, 0
    %12 = vsyncpa [#allocation6], 0
    %13 = vsyncpa [#allocation4], 0
    %s14 = scalar_lea.sflag [#allocation4], 1
    %15 = vsyncpa %s14, 0
    %16 = vsyncpa [#allocation9], 0
    %s17 = scalar_lea.sflag [#allocation9], 1
    %18 = vsyncpa %s17, 0
    loop: start=0, step=1, limit=5
    $region2: #{tpu_custom_call.1} parent=1 // loop_pre_header
      _
    $region3: #{tpu_custom_call.1} parent=1 // loop_header
      %s20 = sphi 0, %s24
      %p21 = scmp.ge.s32.totalorder %s20, 5
      %s30 = sphi 0, %s32
      %s33 = sphi 0, %s30
      %s34 = sphi 0, %s33
      %s50 = sphi 0, %s34
      %s54 = sphi 0, %s54
      %s56 = sphi 0, %s54
      %s57 = sphi 0, %s56
      %s71 = sphi 0, %s57
      %s77 = sphi 0, %s79
      %s80 = sphi 0, %s77
      %s81 = sphi 0, %s80
      %s97 = sphi 0, %s81
      %s103 = sphi 0, %s105
      %s106 = sphi 0, %s103
      %s107 = sphi 0, %s106
      %s123 = sphi 0, %s107
    $region4: #{tpu_custom_call.1} parent=1 // loop_header_branch
      %23 = sbr.rel (%p21) target = $region8
    $region5: #{tpu_custom_call.1} parent=1 // loop_body
      %s25 = ssub.s32 %s20, 1
      %s26 = ssub.s32 %s20, 2
      %s27 = sadd.s32 %s20, 1
      %s28 = ssub.s32 %s20, %s27
      %p29 = scmp.eq.s32.totalorder %s28, 0
      %s31 = sadd.s32 %s30, 1
      %s32 = scalar_select %p29, %s30, %s31
      %p35 = pneg %p29
      %p36 = scmp.eq.s32.totalorder %s20, 2
      %p37 = por %p35, %p36
      %p38 = scmp.ne.s32.totalorder %s30, %s33
      %p39 = scmp.eq.s32.totalorder %s20, 0
      %p40 = por %p38, %p39
      %p41 = scmp.ne.s32.totalorder %s30, %s33
      %p42 = scmp.eq.s32.totalorder %s25, 2
      %p43 = por %p41, %p42
      %p44 = scmp.ne.s32.totalorder %s33, %s34
      %p45 = scmp.eq.s32.totalorder %s25, 0
      %p46 = por %p44, %p45
      %p47 = scmp.ne.s32.totalorder %s33, %s34
      %p48 = scmp.eq.s32.totalorder %s26, 2
      %p49 = por %p47, %p48
      %p51 = scmp.ne.s32.totalorder %s34, %s50
      %p52 = scmp.eq.s32.totalorder %s26, 0
      %p53 = por %p51, %p52
      %s55 = sadd.s32 %s54, 1
      %p58 = scmp.eq.s32.totalorder %s20, 2
      %p59 = scmp.ne.s32.totalorder %s54, %s56
      %p60 = scmp.eq.s32.totalorder %s20, 0
      %p61 = por %p59, %p60
      %p62 = scmp.ne.s32.totalorder %s54, %s56
      %p63 = scmp.eq.s32.totalorder %s25, 2
      %p64 = por %p62, %p63
      %p65 = scmp.ne.s32.totalorder %s56, %s57
      %p66 = scmp.eq.s32.totalorder %s25, 0
      %p67 = por %p65, %p66
      %p68 = scmp.ne.s32.totalorder %s56, %s57
      %p69 = scmp.eq.s32.totalorder %s26, 2
      %p70 = por %p68, %p69
      %p72 = scmp.ne.s32.totalorder %s57, %s71
      %p73 = scmp.eq.s32.totalorder %s26, 0
      %p74 = por %p72, %p73
      %s75 = ssub.s32 %s20, %s27
      %p76 = scmp.eq.s32.totalorder %s75, 0
      %s78 = sadd.s32 %s77, 1
      %s79 = scalar_select %p76, %s77, %s78
      %p82 = pneg %p76
      %p83 = scmp.eq.s32.totalorder %s20, 2
      %p84 = por %p82, %p83
      %p85 = scmp.ne.s32.totalorder %s77, %s80
      %p86 = scmp.eq.s32.totalorder %s20, 0
      %p87 = por %p85, %p86
      %p88 = scmp.ne.s32.totalorder %s77, %s80
      %p89 = scmp.eq.s32.totalorder %s25, 2
      %p90 = por %p88, %p89
      %p91 = scmp.ne.s32.totalorder %s80, %s81
      %p92 = scmp.eq.s32.totalorder %s25, 0
      %p93 = por %p91, %p92
      %p94 = scmp.ne.s32.totalorder %s80, %s81
      %p95 = scmp.eq.s32.totalorder %s26, 2
      %p96 = por %p94, %p95
      %p98 = scmp.ne.s32.totalorder %s81, %s97
      %p99 = scmp.eq.s32.totalorder %s26, 0
      %p100 = por %p98, %p99
      %s101 = ssub.s32 %s20, %s27
      %p102 = scmp.eq.s32.totalorder %s101, 0
      %s104 = sadd.s32 %s103, 1
      %s105 = scalar_select %p102, %s103, %s104
      %p108 = pneg %p102
      %p109 = scmp.eq.s32.totalorder %s20, 2
      %p110 = por %p108, %p109
      %p111 = scmp.ne.s32.totalorder %s103, %s106
      %p112 = scmp.eq.s32.totalorder %s20, 0
      %p113 = por %p111, %p112
      %p114 = scmp.ne.s32.totalorder %s103, %s106
      %p115 = scmp.eq.s32.totalorder %s25, 2
      %p116 = por %p114, %p115
      %p117 = scmp.ne.s32.totalorder %s106, %s107
      %p118 = scmp.eq.s32.totalorder %s25, 0
      %p119 = por %p117, %p118
      %p120 = scmp.ne.s32.totalorder %s106, %s107
      %p121 = scmp.eq.s32.totalorder %s26, 2
      %p122 = por %p120, %p121
      %p124 = scmp.ne.s32.totalorder %s107, %s123
      %p125 = scmp.eq.s32.totalorder %s26, 0
      %p126 = por %p124, %p125
      %p127 = scmp.le.s32.totalorder 1, %s20
      %p128 = scmp.lt.s32.totalorder %s20, 4
      %p129 = pnand %p127, %p128
      %p130 = pneg %p129
      // Predicated region
      $region9: #{tpu_custom_call.1} parent=5 // pred_check
        _
      $region10: #{tpu_custom_call.1} parent=5 // pred_check_branch
        %132 = sbr.rel (%p129) target = $region12
      $region11: #{tpu_custom_call.1} parent=5 // pred_region
        %s133 = ssub.s32 %s20, 1
        // Predicated region
        $region13: #{tpu_custom_call.1} parent=11 // pred_check
          %p134 = pneg %p67
        $region14: #{tpu_custom_call.1} parent=11 // pred_check_branch
          %136 = sbr.rel (%p134) target = $region16
        $region15: #{tpu_custom_call.1} parent=11 // pred_region
          %s138 = ssub.s32 1024, 1024
          %139 = vsyncadd [#allocation6], %s138
          %s140 = sshll.u32 [#allocation5], 4
          %s141 = int_to_ptr.vmem [resolvable:$true] %s140
          %146 = dma.hbm_to_vmem [thread:$0]  %s1, 1024, %s141, [#allocation6], 64, 64, 4
        $region16: #{tpu_custom_call.1} parent=11 // pred_fallthru
          _
      $region12: #{tpu_custom_call.1} parent=5 // pred_fallthru
        _
      %p147 = scmp.lt.s32.totalorder %s20, 3
      // Predicated region
      $region17: #{tpu_custom_call.1} parent=5 // pred_check
        %p148 = pneg %p147
      $region18: #{tpu_custom_call.1} parent=5 // pred_check_branch
        %150 = sbr.rel (%p148) target = $region20
      $region19: #{tpu_custom_call.1} parent=5 // pred_region
        // Predicated region
        $region21: #{tpu_custom_call.1} parent=19 // pred_check
          %p151 = pneg %p40
        $region22: #{tpu_custom_call.1} parent=19 // pred_check_branch
          %153 = sbr.rel (%p151) target = $region24
        $region23: #{tpu_custom_call.1} parent=19 // pred_region
          %s154 = sand.u32 %s30, 1
          %s155 = scalar_lea.sflag [#allocation3], %s154
          %s156 = sand.u32 %s30, 1
          %s157 = smul.addr %s156, 24
          %s158 = scalar_lea.vmem [#allocation2], %s157
          %s159 = smul.u32 6, %s20
          %s161 = ssub.s32 384, 384
          %162 = vsyncadd %s155, %s161
          %s163 = smul.addr %s159, 64
          %s164 = scalar_lea.hbm %s0, %s163
          %s165 = sshll.u32 %s158, 4
          %s166 = int_to_ptr.vmem [resolvable:$true] %s165
          %171 = dma.hbm_to_vmem [thread:$0]  %s164, 384, %s166, %s155, 64, 64, 4
        $region24: #{tpu_custom_call.1} parent=19 // pred_fallthru
          _
      $region20: #{tpu_custom_call.1} parent=5 // pred_fallthru
        _
      %p172 = scmp.le.s32.totalorder 1, %s20
      %p173 = scmp.lt.s32.totalorder %s20, 4
      %p174 = pnand %p172, %p173
      %p175 = pneg %p174
      // Predicated region
      $region25: #{tpu_custom_call.1} parent=5 // pred_check
        _
      $region26: #{tpu_custom_call.1} parent=5 // pred_check_branch
        %177 = sbr.rel (%p174) target = $region28
      $region27: #{tpu_custom_call.1} parent=5 // pred_region
        %s178 = ssub.s32 %s20, 1
        %s179 = sand.u32 %s33, 1
        %s180 = scalar_lea.sflag [#allocation3], %s179
        %s181 = sand.u32 %s33, 1
        %s182 = smul.addr %s181, 24
        %s183 = scalar_lea.vmem [#allocation2], %s182
        // Predicated region
        $region29: #{tpu_custom_call.1} parent=27 // pred_check
          %p184 = pneg %p46
        $region30: #{tpu_custom_call.1} parent=27 // pred_check_branch
          %186 = sbr.rel (%p184) target = $region32
        $region31: #{tpu_custom_call.1} parent=27 // pred_region
          %187 = dma.done %s180, 384
        $region32: #{tpu_custom_call.1} parent=27 // pred_fallthru
          _
        // Predicated region
        $region33: #{tpu_custom_call.1} parent=27 // pred_check
          %p188 = pneg %p67
        $region34: #{tpu_custom_call.1} parent=27 // pred_check_branch
          %190 = sbr.rel (%p188) target = $region36
        $region35: #{tpu_custom_call.1} parent=27 // pred_region
          %191 = dma.done [#allocation6], 1024
        $region36: #{tpu_custom_call.1} parent=27 // pred_fallthru
          _
        %s192 = sand.u32 %s33, 1
        %s193 = scalar_lea.sflag [#allocation3], %s192
        %s194 = sand.u32 %s33, 1
        %s195 = smul.addr %s194, 24
        %s196 = scalar_lea.vmem [#allocation2], %s195
        %p197 = pneg %p46
        %p198 = pneg %p43
        %p199 = pneg %p67
        %p200 = pneg %p64
        %p201 = pneg %p93
        %p202 = pneg %p90
        %s203 = sand.u32 %s80, 1
        %s204 = scalar_lea.sflag [#allocation4], %s203
        %s205 = sand.u32 %s80, 1
        %s206 = smul.addr %s205, 48
        %s207 = scalar_lea.vmem [#allocation7], %s206
        %p208 = pneg %p119
        %p209 = pneg %p116
        %s210 = sand.u32 %s106, 1
        %s211 = scalar_lea.sflag [#allocation9], %s210
        %s212 = sand.u32 %s106, 1
        %s213 = smul.addr %s212, 2
        %s214 = scalar_lea.vmem [#allocation8], %s213
        %s215 = smul.u32 6, %s25
        %s216 = smul.u32 6, %s25
        %v218 = vld [vmem:[%s183] sm:$0xf]
        %v219 = vld [vmem:[%s183 + $0x4] sm:$0xf]
        %v220 = vld [vmem:[%s183 + $0x8] sm:$0xf]
        %v221 = vld [vmem:[%s183 + $0xc] sm:$0xf]
        %v222 = vld [vmem:[%s183 + $0x10] sm:$0xf]
        %v223 = vld [vmem:[%s183 + $0x14] sm:$0xf]
        %v224 = vld [vmem:[#allocation5] sm:$0xf]
        %v225 = vld [vmem:[#allocation5 + $0x4] sm:$0xf]
        %v226 = vld [vmem:[#allocation5 + $0x8] sm:$0xf]
        %v227 = vld [vmem:[#allocation5 + $0xc] sm:$0xf]
        %v228 = vld [vmem:[#allocation5 + $0x10] sm:$0xf]
        %v229 = vld [vmem:[#allocation5 + $0x14] sm:$0xf]
        %v230 = vld [vmem:[#allocation5 + $0x18] sm:$0xf]
        %v231 = vld [vmem:[#allocation5 + $0x1c] sm:$0xf]
        %v232 = vld [vmem:[#allocation5 + $0x20] sm:$0xf]
        %v233 = vld [vmem:[#allocation5 + $0x24] sm:$0xf]
        %v234 = vld [vmem:[#allocation5 + $0x28] sm:$0xf]
        %v235 = vld [vmem:[#allocation5 + $0x2c] sm:$0xf]
        %v236 = vld [vmem:[#allocation5 + $0x30] sm:$0xf]
        %v237 = vld [vmem:[#allocation5 + $0x34] sm:$0xf]
        %v238 = vld [vmem:[#allocation5 + $0x38] sm:$0xf]
        %v239 = vld [vmem:[#allocation5 + $0x3c] sm:$0xf]
        %v246 = vunpack.c.l.b16 %v218
        %v247 = vunpack.c.l.b16 %v219
        %v248 = vunpack.c.l.b16 %v220
        %v249 = vunpack.c.l.b16 %v221
        %v250 = vunpack.c.l.b16 %v222
        %v251 = vunpack.c.l.b16 %v223
        %v252 = vpack.c.b16 %v247, %v246
        %v253 = vpack.c.b16 %v249, %v248
        %v254 = vpack.c.b16 %v251, %v250
        %v274 = vunpack.c.l.b16 %v224
        %v275 = vunpack.c.l.b16 %v225
        %v276 = vunpack.c.l.b16 %v226
        %v277 = vunpack.c.l.b16 %v227
        %v278 = vunpack.c.l.b16 %v228
        %v279 = vunpack.c.l.b16 %v229
        %v280 = vunpack.c.l.b16 %v230
        %v281 = vunpack.c.l.b16 %v231
        %v282 = vunpack.c.l.b16 %v232
        %v283 = vunpack.c.l.b16 %v233
        %v284 = vunpack.c.l.b16 %v234
        %v285 = vunpack.c.l.b16 %v235
        %v286 = vunpack.c.l.b16 %v236
        %v287 = vunpack.c.l.b16 %v237
        %v288 = vunpack.c.l.b16 %v238
        %v289 = vunpack.c.l.b16 %v239
        %v290 = vpack.c.b16 %v275, %v274
        %v291 = vpack.c.b16 %v277, %v276
        %v292 = vpack.c.b16 %v279, %v278
        %v293 = vpack.c.b16 %v281, %v280
        %v294 = vpack.c.b16 %v283, %v282
        %v295 = vpack.c.b16 %v285, %v284
        %v296 = vpack.c.b16 %v287, %v286
        %v297 = vpack.c.b16 %v289, %v288
        %306 = vmatprep.subr.bf16.mxu0 0
        %307 = vmatpush1.bf16.msra.mxu0 %v297
        %308 = vmatprep.subr.bf16.mxu0 0
        %309 = vmatpush1.bf16.msra.mxu0 %v296
        %310 = vmatprep.subr.bf16.mxu0 0
        %311 = vmatpush1.bf16.msra.mxu0 %v295
        %312 = vmatprep.subr.bf16.mxu0 0
        %313 = vmatpush1.bf16.msra.mxu0 %v294
        %314 = vmatprep.subr.bf16.mxu0 0
        %315 = vmatpush1.bf16.msra.mxu0 %v293
        %316 = vmatprep.subr.bf16.mxu0 0
        %317 = vmatpush1.bf16.msra.mxu0 %v292
        %318 = vmatprep.subr.bf16.mxu0 0
        %319 = vmatpush1.bf16.msra.mxu0 %v291
        %320 = vmatprep.subr.bf16.mxu0 0
        %321 = vmatpush1.bf16.msra.mxu0 %v290
        %322 = vmatprep.subr.bf16.mxu0 0
        %323 = vmatpush2.bf16.msra.mxu0 0
        %324 = vmatprep.subr.bf16.mxu0 0
        %325 = vmatpush2.bf16.msra.mxu0 0
        %326 = vmatprep.subr.bf16.mxu0 0
        %327 = vmatpush2.bf16.msra.mxu0 0
        %328 = vmatprep.subr.bf16.mxu0 0
        %329 = vmatpush2.bf16.msra.mxu0 0
        %330 = vmatprep.subr.bf16.mxu0 0
        %331 = vmatpush2.bf16.msra.mxu0 0
        %332 = vmatprep.subr.bf16.mxu0 0
        %333 = vmatpush2.bf16.msra.mxu0 0
        %334 = vmatprep.subr.bf16.mxu0 0
        %335 = vmatpush2.bf16.msra.mxu0 0
        %336 = vmatprep.subr.bf16.mxu0 0
        %337 = vmatpush2.bf16.msra.mxu0 0
        %338 = vmatprep.mubr.bf16.mxu0 0
        %339 = vmatmul.mubr.bf16.gmra.mxu0 %v252
        %v340 = vpop.f32.mrf.mxu0
        %v341 = vadd.f32 0.0, %v340
        %v342 = vpop.f32.mrf.mxu0
        %v343 = vpop.f32.mrf.mxu0
        %v344 = vadd.f32 0.0, %v343
        %v345 = vpop.f32.mrf.mxu0
        %346 = vmatprep.mubr.bf16.mxu0 0
        %347 = vmatmul.mubr.bf16.gmra.mxu0 %v253
        %v348 = vpop.f32.mrf.mxu0
        %v349 = vadd.f32 0.0, %v348
        %v350 = vpop.f32.mrf.mxu0
        %v351 = vpop.f32.mrf.mxu0
        %v352 = vadd.f32 0.0, %v351
        %v353 = vpop.f32.mrf.mxu0
        %354 = vmatprep.mubr.bf16.mxu0 0
        %355 = vmatmul.mubr.bf16.gmra.mxu0 %v254
        %v356 = vpop.f32.mrf.mxu0
        %v357 = vadd.f32 0.0, %v356
        %v358 = vpop.f32.mrf.mxu0
        %v359 = vpop.f32.mrf.mxu0
        %v360 = vadd.f32 0.0, %v359
        %v361 = vpop.f32.mrf.mxu0
        %362 = vdwg.mxu0
        %363 = vst [vmem:[%s207] sm:$0xff] %v341
        %364 = vst [vmem:[%s207 + $0x8] sm:$0xff] %v344
        %365 = vst [vmem:[%s207 + $0x10] sm:$0xff] %v349
        %366 = vst [vmem:[%s207 + $0x18] sm:$0xff] %v352
        %367 = vst [vmem:[%s207 + $0x20] sm:$0xff] %v357
        %368 = vst [vmem:[%s207 + $0x28] sm:$0xff] %v360
        %v369 = vadd.f32 %v341, %v344
        %v370 = vadd.f32 %v369, %v349
        %v371 = vadd.f32 %v370, %v352
        %v372 = vadd.f32 %v371, %v357
        %v373 = vadd.f32 %v372, %v360
        %v374 = vrot.slane %v373, 4
        %v375 = vadd.f32 %v373, %v374
        %v376 = vrot.slane %v375, 2
        %v377 = vadd.f32 %v375, %v376
        %v378 = vrot.slane %v377, 1
        %v379 = vadd.f32 %v377, %v378
        %v380 = vmul.f32 %v341, %v341
        %v381 = vmul.f32 %v344, %v344
        %v382 = vmul.f32 %v349, %v349
        %v383 = vmul.f32 %v352, %v352
        %v384 = vmul.f32 %v357, %v357
        %v385 = vmul.f32 %v360, %v360
        %v386 = vadd.f32 %v380, %v381
        %v387 = vadd.f32 %v386, %v382
        %v388 = vadd.f32 %v387, %v383
        %v389 = vadd.f32 %v388, %v384
        %v390 = vadd.f32 %v389, %v385
        %v391 = vrot.slane %v390, 4
        %v392 = vadd.f32 %v390, %v391
        %v393 = vrot.slane %v392, 2
        %v394 = vadd.f32 %v392, %v393
        %v395 = vrot.slane %v394, 1
        %v396 = vadd.f32 %v394, %v395
        %v397 = vlaneseq
        %v398 = vshrl.u32 %v397, 7
        %vm399 = vcmp.eq.s32.totalorder %v398, 0
        %v400 = vsel %vm399, %v379, %v396
        %401 = vst [vmem:[%s214] sm:$0x3] %v400
        %s402 = sand.u32 %s80, 1
        %s403 = scalar_lea.sflag [#allocation4], %s402
        %s404 = sand.u32 %s80, 1
        %s405 = smul.addr %s404, 48
        %s406 = scalar_lea.vmem [#allocation7], %s405
        %s407 = sand.u32 %s106, 1
        %s408 = scalar_lea.sflag [#allocation9], %s407
        %s409 = sand.u32 %s106, 1
        %s410 = smul.addr %s409, 2
        %s411 = scalar_lea.vmem [#allocation8], %s410
        // Predicated region
        $region37: #{tpu_custom_call.1} parent=27 // pred_check
          %p412 = pneg %p90
        $region38: #{tpu_custom_call.1} parent=27 // pred_check_branch
          %414 = sbr.rel (%p412) target = $region40
        $region39: #{tpu_custom_call.1} parent=27 // pred_region
          %s415 = smul.u32 6, %s25
          %s417 = ssub.s32 768, 768
          %418 = vsyncadd %s403, %s417
          %s419 = smul.addr %s415, 128
          %s420 = scalar_lea.hbm %s2, %s419
          %s421 = sshll.u32 %s406, 4
          %s422 = int_to_ptr.vmem [resolvable:$true] %s421
          %427 = dma.vmem_to_hbm [thread:$0]  %s422, 768, %s420, %s403, 128, 128, 8
        $region40: #{tpu_custom_call.1} parent=27 // pred_fallthru
          _
        // Predicated region
        $region41: #{tpu_custom_call.1} parent=27 // pred_check
          %p428 = pneg %p116
        $region42: #{tpu_custom_call.1} parent=27 // pred_check_branch
          %430 = sbr.rel (%p428) target = $region44
        $region43: #{tpu_custom_call.1} parent=27 // pred_region
          %s432 = ssub.s32 32, 32
          %433 = vsyncadd %s408, %s432
          %s434 = smul.addr %s25, 32
          %s435 = scalar_lea.hbm %s3, %s434
          %s437 = sshll.u32 %s411, 4
          %s438 = int_to_ptr.vmem [resolvable:$true] %s437
          %440 = dma.vmem_to_hbm [thread:$0]  %s438, 32, %s435, %s408
        $region44: #{tpu_custom_call.1} parent=27 // pred_fallthru
          _
      $region28: #{tpu_custom_call.1} parent=5 // pred_fallthru
        _
      %p441 = scmp.le.s32.totalorder 2, %s20
      // Predicated region
      $region45: #{tpu_custom_call.1} parent=5 // pred_check
        %p442 = pneg %p441
      $region46: #{tpu_custom_call.1} parent=5 // pred_check_branch
        %444 = sbr.rel (%p442) target = $region48
      $region47: #{tpu_custom_call.1} parent=5 // pred_region
        %s445 = ssub.s32 %s20, 2
        // Predicated region
        $region49: #{tpu_custom_call.1} parent=47 // pred_check
          %p446 = pneg %p96
        $region50: #{tpu_custom_call.1} parent=47 // pred_check_branch
          %448 = sbr.rel (%p446) target = $region52
        $region51: #{tpu_custom_call.1} parent=47 // pred_region
          %s449 = sand.u32 %s81, 1
          %s450 = scalar_lea.sflag [#allocation4], %s449
          %s451 = sand.u32 %s81, 1
          %s452 = smul.addr %s451, 48
          %s453 = scalar_lea.vmem [#allocation7], %s452
          %454 = dma.done %s450, 768
        $region52: #{tpu_custom_call.1} parent=47 // pred_fallthru
          _
        // Predicated region
        $region53: #{tpu_custom_call.1} parent=47 // pred_check
          %p455 = pneg %p122
        $region54: #{tpu_custom_call.1} parent=47 // pred_check_branch
          %457 = sbr.rel (%p455) target = $region56
        $region55: #{tpu_custom_call.1} parent=47 // pred_region
          %s458 = sand.u32 %s107, 1
          %s459 = scalar_lea.sflag [#allocation9], %s458
          %s460 = sand.u32 %s107, 1
          %s461 = smul.addr %s460, 2
          %s462 = scalar_lea.vmem [#allocation8], %s461
          %463 = dma.done %s459, 32
        $region56: #{tpu_custom_call.1} parent=47 // pred_fallthru
          _
      $region48: #{tpu_custom_call.1} parent=5 // pred_fallthru
        _
    $region6: #{tpu_custom_call.1} parent=1 // loop_footer
      %s24 = sadd.s32 1, %s20
    $region7: #{tpu_custom_call.1} parent=1 // loop_footer_branch
      %19 = sbr.rel target = $region3
    $region8: #{tpu_custom_call.1} parent=1 // loop_exit
      _
    %464 = vsyncpa [#allocation3], 1
    %s465 = scalar_lea.sflag [#allocation3], 1
    %466 = vsyncpa %s465, 1
    %467 = vsyncpa [#allocation6], 1
    %468 = vsyncpa [#allocation4], 1
    %s469 = scalar_lea.sflag [#allocation4], 1
    %470 = vsyncpa %s469, 1
    %471 = vsyncpa [#allocation9], 1
    %s472 = scalar_lea.sflag [#allocation9], 1
    %473 = vsyncpa %s472, 1

</llo_original>
